<compile_context>
chip_gen: v5e
topology: v5e:2x2
jax: 0.10.0
libtpu: 0.0.40
codegen_flags: <defaults>
</compile_context>

<pallas_src>
import jax
import jax.numpy as jnp
from jax.experimental import pallas as pl
from jax.experimental.pallas import tpu as pltpu

_LANE = 128     # TPU lane width (last-dim vreg extent)
_SUBLANE = 8    # TPU sublane width (second-to-last dim)


def _round_up(x, m):
    return ((x + m - 1) // m) * m


def _vmem_budgets():
    """(tile budget bytes, scoped vmem_limit_bytes) per TPU generation."""
    kind = ""
    try:
        kind = jax.devices()[0].device_kind.lower()
    except Exception:  # pragma: no cover - defensive; fall through to default
        pass
    if "v5" in kind or "v6" in kind:
        # 128 MiB physical VMEM: be generous so the batch tile stays large.
        return 64 * 1024 * 1024, 80 * 1024 * 1024
    # v7x (64 MiB physical per TC) or unknown: conservative budgets.
    return 36 * 1024 * 1024, 48 * 1024 * 1024


def _choose_k_tiling(in_dim, out_dim, budget_bytes):
    """Return (tk, nk) for the contraction (in_dim) axis.

    Split K only when the full-K weight block would eat more than ~1/3 of the
    VMEM budget (perf-review trigger).  tk must be a multiple of 128 (x's
    block last dim) and divide in_dim exactly so every K block is full.
    """
    if 2 * in_dim * out_dim * 4 <= budget_bytes // 3:
        return in_dim, 1
    best = None
    for t in range(_LANE, in_dim, _LANE):
        if in_dim % t == 0 and 2 * t * out_dim * 4 <= budget_bytes // 3:
            best = t  # ascending -> ends at the largest valid tk
    if best is None:
        # TODO(synk): zero-pad in_dim (x columns / W rows) to a multiple of 128
        # to enable K tiling for awkward in_dim; until then keep one K block
        # and let the batch tile shrink instead.
        return in_dim, 1
    return best, in_dim // best


def _choose_batch_tile(batch, tk, out_dim, nk, budget_bytes, tb_max=1024):
    """Largest batch tile (multiple of 8, <= tb_max) fitting the VMEM budget.

    Counts: pinned (or K-pipelined) weight block, double-buffered x / fc / sm
    tiles, and the in-kernel f32 intermediates (y, e) plus the accumulator
    scratch — the items the previous heuristic under-counted.
    """
    w_bufs = 1 if nk == 1 else 2          # pinned vs K-pipelined weight block
    w_bytes = w_bufs * tk * out_dim * 4 + 2 * out_dim * 4
    tb = min(tb_max, _round_up(batch, _SUBLANE))
    while tb > _SUBLANE:
        x_bytes = 2 * tb * tk * 4                 # double-buffered input tile
        out_bytes = 2 * 2 * tb * out_dim * 4      # double-buffered fc + sm tiles
        tmp_bytes = 3 * tb * out_dim * 4          # y, e intermediates + acc scratch
        if w_bytes + x_bytes + out_bytes + tmp_bytes <= budget_bytes:
            break
        tb = max(_SUBLANE, _round_up(tb // 2, _SUBLANE))
    # Keep >= 2 grid steps over the batch (when possible) so v7x's two
    # TensorCores both get work and the DMA pipeline overlaps.
    if batch > 2 * _SUBLANE:
        tb = min(tb, _round_up(pl.cdiv(batch, 2), _SUBLANE))
    return max(tb, _SUBLANE)


def _reverse_cls_kernel(x_ref, w_ref, b_ref, fc_ref, sm_ref, acc_ref):
    # x_ref  : (TB, TK)   f32 batch x K tile
    # w_ref  : (TK, N)    f32 pre-transposed weight tile (pinned when nk == 1)
    # b_ref  : (1, N)     f32 bias
    # fc_ref : (TB, N)    linear output            (written on last K step)
    # sm_ref : (TB, N)    softmax(fc, axis=-1)     (written on last K step)
    # acc_ref: (TB, N)    f32 accumulator scratch  (resident across K steps)
    k = pl.program_id(1)

    @pl.when(k == 0)
    def _init():
        acc_ref[...] = jnp.zeros_like(acc_ref)

    # MXU matmul with f32 accumulation; W is already in [K, N] layout.
    acc_ref[...] += jnp.dot(x_ref[...], w_ref[...],
                            preferred_element_type=jnp.float32)

    @pl.when(k == pl.num_programs(1) - 1)
    def _finalize():
        y = acc_ref[...] + b_ref[...]
        fc_ref[...] = y.astype(fc_ref.dtype)
        # Numerically-stable softmax over the (unpadded) class dim.  Exact
        # division: the kernel is HBM-bound so this is free, and it keeps
        # softmax rows summing to 1 to f32 precision.
        m = jnp.max(y, axis=-1, keepdims=True)
        e = jnp.exp(y - m)
        sm_ref[...] = (e / jnp.sum(e, axis=-1, keepdims=True)).astype(sm_ref.dtype)


def prepare_reverse_cls_params(w, b):
    """One-time layout plumbing, hoisted out of the forward path.

    w: (out_dim, in_dim) PyTorch nn.Linear weight -> W^T (in_dim, out_dim)
    b: (out_dim,)                                  -> (1, out_dim)
    """
    wt = jnp.asarray(w, jnp.float32).T
    b2d = jnp.asarray(b, jnp.float32).reshape(1, -1)
    return wt, b2d


def reverse_cls_forward(x, wt, b2d, *, batch_tile=None):
    """Returns [x, fc(x), softmax(fc(x))] matching ReverseCLS.forward.

    x  : (B, in_dim) float
    wt : (in_dim, out_dim) f32  (pre-transposed weight from prepare_reverse_cls_params)
    b2d: (1, out_dim) f32
    """
    B, in_dim = x.shape
    in_dim_w, out_dim = wt.shape
    assert in_dim == in_dim_w, "x / weight in_dim mismatch"

    budget, vmem_limit = _vmem_budgets()
    tk, nk = _choose_k_tiling(in_dim, out_dim, budget)
    tb = (batch_tile if batch_tile is not None
          else _choose_batch_tile(B, tk, out_dim, nk, budget))

    x32 = x.astype(jnp.float32)

    def build(single_buffer_pinned):
        pinned_kw = {}
        if single_buffer_pinned and nk == 1:
            # Pinned weight/bias blocks (constant index_map): no double buffer.
            pinned_kw = dict(pipeline_mode=pl.Buffered(1))
        return pl.pallas_call(
            _reverse_cls_kernel,
            out_shape=(
                jax.ShapeDtypeStruct((B, out_dim), jnp.float32),
                jax.ShapeDtypeStruct((B, out_dim), jnp.float32),
            ),
            grid_spec=pltpu.PrefetchScalarGridSpec(
                num_scalar_prefetch=0,
                grid=(pl.cdiv(B, tb), nk),
                in_specs=[
                    pl.BlockSpec((tb, tk), lambda i, k: (i, k)),                 # x
                    pl.BlockSpec((tk, out_dim), lambda i, k: (k, 0), **pinned_kw),  # W^T
                    pl.BlockSpec((1, out_dim), lambda i, k: (0, 0), **pinned_kw),   # bias
                ],
                out_specs=[
                    pl.BlockSpec((tb, out_dim), lambda i, k: (i, 0)),            # fc
                    pl.BlockSpec((tb, out_dim), lambda i, k: (i, 0)),            # softmax
                ],
                scratch_shapes=[pltpu.VMEM((tb, out_dim), jnp.float32)],         # acc
            ),
            compiler_params=pltpu.CompilerParams(
                dimension_semantics=("parallel", "arbitrary"),
                vmem_limit_bytes=vmem_limit,
            ),
        )

    try:
        fc, sm = build(True)(x32, wt, b2d)
    except Exception:
        # Fallback for Pallas versions without BlockSpec(pipeline_mode=...);
        # identical semantics, default double-buffered pinned weights.
        fc, sm = build(False)(x32, wt, b2d)

    return [x, fc, sm]


if __name__ == "__main__":
    # Small shapes consistent with the module: batch=8, in_dim=32, out_dim=16.
    B, in_dim, out_dim = 8, 32, 16

    key = jax.random.PRNGKey(0)
    kx, kw, kb = jax.random.split(key, 3)

    x = jax.random.normal(kx, (B, in_dim), dtype=jnp.float32)
    # Deterministic Linear params (PyTorch-like uniform init range).
    bound = 1.0 / jnp.sqrt(jnp.float32(in_dim))
    w = jax.random.uniform(kw, (out_dim, in_dim), jnp.float32, -bound, bound)
    b = jax.random.uniform(kb, (out_dim,), jnp.float32, -bound, bound)

    # One-time parameter layout prep (hoisted out of the forward path).
    wt, b2d = prepare_reverse_cls_params(w, b)

    outs = reverse_cls_forward(x, wt, b2d)
    outs = [jax.block_until_ready(o) for o in outs]

    # Reference check against plain JAX.
    fc_ref = x @ w.T + b
    sm_ref = jax.nn.softmax(fc_ref, axis=-1)
    assert jnp.array_equal(outs[0], x)
    assert jnp.allclose(outs[1], fc_ref, atol=1e-5, rtol=1e-5)
    assert jnp.allclose(outs[2], sm_ref, atol=1e-5, rtol=1e-5)

    print("KERNEL_OK")
</pallas_src>

<mosaic_0001>
module attributes {stable_mosaic.version = 11 : i64} {
  func.func @_reverse_cls_kernel(%arg0: i32, %arg1: i32, %arg2: memref<8x32xf32, #tpu.memory_space<vmem>>, %arg3: memref<32x16xf32, #tpu.memory_space<vmem>>, %arg4: memref<1x16xf32, #tpu.memory_space<vmem>>, %arg5: memref<8x16xf32, #tpu.memory_space<vmem>>, %arg6: memref<8x16xf32, #tpu.memory_space<vmem>>, %arg7: memref<8x16xf32, #tpu.memory_space<vmem>>) attributes {dimension_semantics = [#tpu.dimension_semantics<parallel>, #tpu.dimension_semantics<arbitrary>], iteration_bounds = array<i64: 1, 1>, scalar_prefetch = 0 : i64, scratch_operands = 1 : i64, tpu.core_type = #tpu.core_type<tc>, window_params = [{transform_indices = @transform_0, window_bounds = array<i64: 8, 32>}, {pipeline_mode = #tpu.pipeline_mode<synchronous>, transform_indices = @transform_1, window_bounds = array<i64: 32, 16>}, {pipeline_mode = #tpu.pipeline_mode<synchronous>, transform_indices = @transform_2, window_bounds = array<i64: 1, 16>}, {transform_indices = @transform_3, window_bounds = array<i64: 8, 16>}, {transform_indices = @transform_4, window_bounds = array<i64: 8, 16>}]} {
    %c0_i32 = arith.constant 0 : i32
    %0 = arith.cmpi eq, %arg1, %c0_i32 : i32
    %1 = arith.extui %0 : i1 to i32
    %c0_i32_0 = arith.constant 0 : i32
    %2 = arith.cmpi ne, %1, %c0_i32_0 : i32
    scf.if %2 {
      %cst_10 = arith.constant 0.000000e+00 : f32
      %12 = vector.broadcast %cst_10 : f32 to vector<8x16xf32>
      %c0_11 = arith.constant 0 : index
      %c0_12 = arith.constant 0 : index
      %13 = vector.load %arg7[%c0_11, %c0_12] : memref<8x16xf32, #tpu.memory_space<vmem>>, vector<8x16xf32>
      tpu.vector_store %arg7[%c0_11, %c0_12], %12 {strides = array<i32>} : memref<8x16xf32, #tpu.memory_space<vmem>>, vector<8x16xf32>,
    } else {
    }
    %c0 = arith.constant 0 : index
    %c0_1 = arith.constant 0 : index
    %3 = vector.load %arg7[%c0, %c0_1] : memref<8x16xf32, #tpu.memory_space<vmem>>, vector<8x16xf32>
    %c0_2 = arith.constant 0 : index
    %c0_3 = arith.constant 0 : index
    %4 = vector.load %arg2[%c0_2, %c0_3] : memref<8x32xf32, #tpu.memory_space<vmem>>, vector<8x32xf32>
    %c0_4 = arith.constant 0 : index
    %c0_5 = arith.constant 0 : index
    %5 = vector.load %arg3[%c0_4, %c0_5] : memref<32x16xf32, #tpu.memory_space<vmem>>, vector<32x16xf32>
    %cst = arith.constant dense<0.000000e+00> : vector<8x16xf32>
    %6 = tpu.matmul %4, %5, %cst {dimension_numbers = #tpu.dot_dimension_numbers<[1], [0], [0], [1], [0, 0, 1, 1], [], []>} : vector<8x32xf32>, vector<32x16xf32>, vector<8x16xf32> -> vector<8x16xf32>
    %7 = arith.addf %3, %6 : vector<8x16xf32>
    %c0_6 = arith.constant 0 : index
    %c0_7 = arith.constant 0 : index
    %8 = vector.load %arg7[%c0_6, %c0_7] : memref<8x16xf32, #tpu.memory_space<vmem>>, vector<8x16xf32>
    tpu.vector_store %arg7[%c0_6, %c0_7], %7 {strides = array<i32>} : memref<8x16xf32, #tpu.memory_space<vmem>>, vector<8x16xf32>,
    %c0_i32_8 = arith.constant 0 : i32
    %9 = arith.cmpi eq, %arg1, %c0_i32_8 : i32
    %10 = arith.extui %9 : i1 to i32
    %c0_i32_9 = arith.constant 0 : i32
    %11 = arith.cmpi ne, %10, %c0_i32_9 : i32
    scf.if %11 {
      %c0_10 = arith.constant 0 : index
      %c0_11 = arith.constant 0 : index
      %12 = vector.load %arg7[%c0_10, %c0_11] : memref<8x16xf32, #tpu.memory_space<vmem>>, vector<8x16xf32>
      %c0_12 = arith.constant 0 : index
      %c0_13 = arith.constant 0 : index
      %13 = vector.load %arg4[%c0_12, %c0_13] : memref<1x16xf32, #tpu.memory_space<vmem>>, vector<1x16xf32>
      %14 = vector.broadcast %13 : vector<1x16xf32> to vector<8x16xf32>
      %15 = arith.addf %12, %14 : vector<8x16xf32>
      %c0_14 = arith.constant 0 : index
      %c0_15 = arith.constant 0 : index
      %16 = vector.load %arg5[%c0_14, %c0_15] : memref<8x16xf32, #tpu.memory_space<vmem>>, vector<8x16xf32>
      tpu.vector_store %arg5[%c0_14, %c0_15], %15 {strides = array<i32>} : memref<8x16xf32, #tpu.memory_space<vmem>>, vector<8x16xf32>,
      %cst_16 = arith.constant dense<0xFF800000> : vector<8xf32>
      %17 = vector.multi_reduction <maximumf>, %15, %cst_16 [1] : vector<8x16xf32> to vector<8xf32>
      %18 = vector.shape_cast %17 : vector<8xf32> to vector<8x1xf32>
      %19 = vector.broadcast %18 : vector<8x1xf32> to vector<8x16xf32>
      %20 = arith.subf %15, %19 : vector<8x16xf32>
      %21 = math.exp %20 : vector<8x16xf32>
      %cst_17 = arith.constant dense<0.000000e+00> : vector<8xf32>
      %22 = vector.multi_reduction <add>, %21, %cst_17 [1] : vector<8x16xf32> to vector<8xf32>
      %23 = vector.shape_cast %22 : vector<8xf32> to vector<8x1xf32>
      %24 = vector.broadcast %23 : vector<8x1xf32> to vector<8x16xf32>
      %25 = arith.divf %21, %24 : vector<8x16xf32>
      %c0_18 = arith.constant 0 : index
      %c0_19 = arith.constant 0 : index
      %26 = vector.load %arg6[%c0_18, %c0_19] : memref<8x16xf32, #tpu.memory_space<vmem>>, vector<8x16xf32>
      tpu.vector_store %arg6[%c0_18, %c0_19], %25 {strides = array<i32>} : memref<8x16xf32, #tpu.memory_space<vmem>>, vector<8x16xf32>,
    } else {
    }
    return
  }
  func.func @transform_0(%arg0: i32, %arg1: i32) -> (i32, i32) {
    %c0_i32 = arith.constant 0 : i32
    return %arg0, %arg1 : i32, i32
  }
  func.func @transform_1(%arg0: i32, %arg1: i32) -> (i32, i32) {
    %c0_i32 = arith.constant 0 : i32
    %c0_i32_0 = arith.constant 0 : i32
    return %arg1, %c0_i32 : i32, i32
  }
  func.func @transform_2(%arg0: i32, %arg1: i32) -> (i32, i32) {
    %c0_i32 = arith.constant 0 : i32
    %c0_i32_0 = arith.constant 0 : i32
    %c0_i32_1 = arith.constant 0 : i32
    return %c0_i32, %c0_i32_0 : i32, i32
  }
  func.func @transform_3(%arg0: i32, %arg1: i32) -> (i32, i32) {
    %c0_i32 = arith.constant 0 : i32
    %c0_i32_0 = arith.constant 0 : i32
    return %arg0, %c0_i32 : i32, i32
  }
  func.func @transform_4(%arg0: i32, %arg1: i32) -> (i32, i32) {
    %c0_i32 = arith.constant 0 : i32
    %c0_i32_0 = arith.constant 0 : i32
    return %arg0, %c0_i32 : i32, i32
  }
}

module attributes {stable_mosaic.version = 11 : i64} {
  func.func @_reverse_cls_kernel(%arg0: i32, %arg1: i32, %arg2: memref<8x32xf32, #tpu.memory_space<vmem>>, %arg3: memref<32x16xf32, #tpu.memory_space<vmem>>, %arg4: memref<1x16xf32, #tpu.memory_space<vmem>>, %arg5: memref<8x16xf32, #tpu.memory_space<vmem>>, %arg6: memref<8x16xf32, #tpu.memory_space<vmem>>, %arg7: memref<8x16xf32, #tpu.memory_space<vmem>>) attributes {dimension_semantics = [#tpu.dimension_semantics<parallel>, #tpu.dimension_semantics<arbitrary>], iteration_bounds = array<i64: 1, 1>, scalar_prefetch = 0 : i64, scratch_operands = 1 : i64, tpu.core_type = #tpu.core_type<tc>, window_params = [{transform_indices = @transform_0, window_bounds = array<i64: 8, 32>}, {transform_indices = @transform_1, window_bounds = array<i64: 32, 16>}, {pipeline_mode = #tpu.pipeline_mode<synchronous>, transform_indices = @transform_2, window_bounds = array<i64: 1, 16>}, {transform_indices = @transform_3, window_bounds = array<i64: 8, 16>}, {transform_indices = @transform_4, window_bounds = array<i64: 8, 16>}]} {
    %c0_i32 = arith.constant 0 : i32
    %0 = arith.cmpi eq, %arg1, %c0_i32 : i32
    %1 = arith.extui %0 : i1 to i32
    %c0_i32_0 = arith.constant 0 : i32
    %2 = arith.cmpi ne, %1, %c0_i32_0 : i32
    scf.if %2 {
      %cst_10 = arith.constant 0.000000e+00 : f32
      %12 = vector.broadcast %cst_10 : f32 to vector<8x16xf32>
      %c0_11 = arith.constant 0 : index
      %c0_12 = arith.constant 0 : index
      %13 = vector.load %arg7[%c0_11, %c0_12] : memref<8x16xf32, #tpu.memory_space<vmem>>, vector<8x16xf32>
      tpu.vector_store %arg7[%c0_11, %c0_12], %12 {strides = array<i32>} : memref<8x16xf32, #tpu.memory_space<vmem>>, vector<8x16xf32>,
    } else {
    }
    %c0 = arith.constant 0 : index
    %c0_1 = arith.constant 0 : index
    %3 = vector.load %arg7[%c0, %c0_1] : memref<8x16xf32, #tpu.memory_space<vmem>>, vector<8x16xf32>
    %c0_2 = arith.constant 0 : index
    %c0_3 = arith.constant 0 : index
    %4 = vector.load %arg2[%c0_2, %c0_3] : memref<8x32xf32, #tpu.memory_space<vmem>>, vector<8x32xf32>
    %c0_4 = arith.constant 0 : index
    %c0_5 = arith.constant 0 : index
    %5 = vector.load %arg3[%c0_4, %c0_5] : memref<32x16xf32, #tpu.memory_space<vmem>>, vector<32x16xf32>
    %cst = arith.constant dense<0.000000e+00> : vector<8x16xf32>
    %6 = tpu.matmul %4, %5, %cst {dimension_numbers = #tpu.dot_dimension_numbers<[1], [0], [0], [1], [0, 0, 1, 1], [], []>} : vector<8x32xf32>, vector<32x16xf32>, vector<8x16xf32> -> vector<8x16xf32>
    %7 = arith.addf %3, %6 : vector<8x16xf32>
    %c0_6 = arith.constant 0 : index
    %c0_7 = arith.constant 0 : index
    %8 = vector.load %arg7[%c0_6, %c0_7] : memref<8x16xf32, #tpu.memory_space<vmem>>, vector<8x16xf32>
    tpu.vector_store %arg7[%c0_6, %c0_7], %7 {strides = array<i32>} : memref<8x16xf32, #tpu.memory_space<vmem>>, vector<8x16xf32>,
    %c0_i32_8 = arith.constant 0 : i32
    %9 = arith.cmpi eq, %arg1, %c0_i32_8 : i32
    %10 = arith.extui %9 : i1 to i32
    %c0_i32_9 = arith.constant 0 : i32
    %11 = arith.cmpi ne, %10, %c0_i32_9 : i32
    scf.if %11 {
      %c0_10 = arith.constant 0 : index
      %c0_11 = arith.constant 0 : index
      %12 = vector.load %arg7[%c0_10, %c0_11] : memref<8x16xf32, #tpu.memory_space<vmem>>, vector<8x16xf32>
      %c0_12 = arith.constant 0 : index
      %c0_13 = arith.constant 0 : index
      %13 = vector.load %arg4[%c0_12, %c0_13] : memref<1x16xf32, #tpu.memory_space<vmem>>, vector<1x16xf32>
      %14 = vector.broadcast %13 : vector<1x16xf32> to vector<8x16xf32>
      %15 = arith.addf %12, %14 : vector<8x16xf32>
      %c0_14 = arith.constant 0 : index
      %c0_15 = arith.constant 0 : index
      %16 = vector.load %arg5[%c0_14, %c0_15] : memref<8x16xf32, #tpu.memory_space<vmem>>, vector<8x16xf32>
      tpu.vector_store %arg5[%c0_14, %c0_15], %15 {strides = array<i32>} : memref<8x16xf32, #tpu.memory_space<vmem>>, vector<8x16xf32>,
      %cst_16 = arith.constant dense<0xFF800000> : vector<8xf32>
      %17 = vector.multi_reduction <maximumf>, %15, %cst_16 [1] : vector<8x16xf32> to vector<8xf32>
      %18 = vector.shape_cast %17 : vector<8xf32> to vector<8x1xf32>
      %19 = vector.broadcast %18 : vector<8x1xf32> to vector<8x16xf32>
      %20 = arith.subf %15, %19 : vector<8x16xf32>
      %21 = math.exp %20 : vector<8x16xf32>
      %cst_17 = arith.constant dense<0.000000e+00> : vector<8xf32>
      %22 = vector.multi_reduction <add>, %21, %cst_17 [1] : vector<8x16xf32> to vector<8xf32>
      %23 = vector.shape_cast %22 : vector<8xf32> to vector<8x1xf32>
      %24 = vector.broadcast %23 : vector<8x1xf32> to vector<8x16xf32>
      %25 = arith.divf %21, %24 : vector<8x16xf32>
      %c0_18 = arith.constant 0 : index
      %c0_19 = arith.constant 0 : index
      %26 = vector.load %arg6[%c0_18, %c0_19] : memref<8x16xf32, #tpu.memory_space<vmem>>, vector<8x16xf32>
      tpu.vector_store %arg6[%c0_18, %c0_19], %25 {strides = array<i32>} : memref<8x16xf32, #tpu.memory_space<vmem>>, vector<8x16xf32>,
    } else {
    }
    return
  }
  func.func @transform_0(%arg0: i32, %arg1: i32) -> (i32, i32) {
    %c0_i32 = arith.constant 0 : i32
    return %arg0, %arg1 : i32, i32
  }
  func.func @transform_1(%arg0: i32, %arg1: i32) -> (i32, i32) {
    %c0_i32 = arith.constant 0 : i32
    %c0_i32_0 = arith.constant 0 : i32
    return %arg1, %c0_i32 : i32, i32
  }
  func.func @transform_2(%arg0: i32, %arg1: i32) -> (i32, i32) {
    %c0_i32 = arith.constant 0 : i32
    %c0_i32_0 = arith.constant 0 : i32
    %c0_i32_1 = arith.constant 0 : i32
    return %c0_i32, %c0_i32_0 : i32, i32
  }
  func.func @transform_3(%arg0: i32, %arg1: i32) -> (i32, i32) {
    %c0_i32 = arith.constant 0 : i32
    %c0_i32_0 = arith.constant 0 : i32
    return %arg0, %c0_i32 : i32, i32
  }
  func.func @transform_4(%arg0: i32, %arg1: i32) -> (i32, i32) {
    %c0_i32 = arith.constant 0 : i32
    %c0_i32_0 = arith.constant 0 : i32
    return %arg0, %c0_i32 : i32, i32
  }
}

</mosaic_0001>

<llo_original>
// kernel: tpu_custom_call.1
$region0: #{tpu_custom_call.1}
  #allocation0 [shape = 'u32[]', space=smem, size = 0x4, offset = 0x4, fixed_abs, tag = 'smem constant byte address 0x4 - core index']
  #allocation1 [shape = 'u32[72,128]{1,0:T(1,128)}', space=vmem, size = 0x9000, scoped, tag = 'internal scratch']
  #allocation2 [shape = 'f32[8,16]{1,0:T(8,128)}', space=vmem, size = 0x1000, scoped, tag = 'scratch operand']
  %s0 = inlined_call_operand.vmem [shape: f32[8,32], index: 0, kind: input, shape index: {}]
  %s1 = inlined_call_operand.vmem [shape: f32[32,16], index: 1, kind: input, shape index: {}]
  %s2 = inlined_call_operand.vmem [shape: f32[1,16], index: 2, kind: input, shape index: {}]
  %s3 = inlined_call_operand.hbm [shape: f32[8,16], index: 3, kind: output, shape index: {0}]
  %s4 = inlined_call_operand.hbm [shape: f32[8,16], index: 4, kind: output, shape index: {1}]
  %5 = xla_tuple %s3, %s4
  %s6 = sld [smem:[#allocation0]]
  $region38: #{tpu_custom_call.1} parent=0
    _
  %s8 = ssub.s32 1, %s6
  %s9 = scalar_select 0, %s8, %s6
  $region1: #{tpu_custom_call.1} parent=0
    #allocation3 [shape = 'u8[4096]{0}', space=vmem, size = 0x1000, scoped, tag = 'output window, operand 0, single buffered']
    #allocation4 [shape = 's32[1]{0}', space=sflag, size = 0x4, scoped, tag = 'scoped memory for tpu_custom_call.1']
    #allocation5 [shape = 'u8[4096]{0}', space=vmem, size = 0x1000, scoped, tag = 'output window, operand 1, single buffered']
    #allocation6 [shape = 's32[1]{0}', space=sflag, size = 0x4, scoped, tag = 'scoped memory for tpu_custom_call.1']
    %10 = vsyncpa [#allocation4], 0
    %11 = vsyncpa [#allocation6], 0
    // Predicated region
    $region2: #{tpu_custom_call.1} parent=1 // pred_check
      _
    $region3: #{tpu_custom_call.1} parent=1 // pred_check_branch
      %13 = sbr.rel (0) target = $region5
    $region4: #{tpu_custom_call.1} parent=1 // pred_region
      _
    $region5: #{tpu_custom_call.1} parent=1 // pred_fallthru
      _
    // Predicated region
    $region6: #{tpu_custom_call.1} parent=1 // pred_check
      _
    $region7: #{tpu_custom_call.1} parent=1 // pred_check_branch
      %15 = sbr.rel (0) target = $region9
    $region8: #{tpu_custom_call.1} parent=1 // pred_region
      _
    $region9: #{tpu_custom_call.1} parent=1 // pred_fallthru
      _
    // Predicated region
    $region10: #{tpu_custom_call.1} parent=1 // pred_check
      _
    $region11: #{tpu_custom_call.1} parent=1 // pred_check_branch
      %17 = sbr.rel (0) target = $region13
    $region12: #{tpu_custom_call.1} parent=1 // pred_region
      _
    $region13: #{tpu_custom_call.1} parent=1 // pred_fallthru
      _
    %p18 = scmp.eq.s32.totalorder 0, 0
    // Predicated region
    $region14: #{tpu_custom_call.1} parent=1 // pred_check
      %p19 = pneg %p18
    $region15: #{tpu_custom_call.1} parent=1 // pred_check_branch
      %21 = sbr.rel (%p19) target = $region17
    $region16: #{tpu_custom_call.1} parent=1 // pred_region
      %vm22 = vcmask 130048
      %23 = vst.msk [vmem:[#allocation2] sm:$0xff] %vm22, 0.0
    $region17: #{tpu_custom_call.1} parent=1 // pred_fallthru
      _
    %v24 = vld [vmem:[#allocation2] sm:$0xff]
    %v25 = vld [vmem:[%s0] sm:$0xff]
    %v26 = vld [vmem:[%s1] sm:$0xff]
    %v27 = vld [vmem:[%s1 + $0x8] sm:$0xff]
    %v28 = vld [vmem:[%s1 + $0x10] sm:$0xff]
    %v29 = vld [vmem:[%s1 + $0x18] sm:$0xff]
    %vm30 = vcmask 261120
    %v32 = vsel %vm30, %v25, 0
    %34 = vmatpush.msra.mxu0 0.0
    %35 = vmatpush.msra.mxu0 0.0
    %36 = vmatpush.msra.mxu0 0.0
    %37 = vmatpush.msra.mxu0 0.0
    %38 = vmatpush.msra.mxu0 0.0
    %39 = vmatpush.msra.mxu0 0.0
    %40 = vmatpush.msra.mxu0 0.0
    %41 = vmatpush.msra.mxu0 0.0
    %42 = vmatpush.msra.mxu0 0.0
    %43 = vmatpush.msra.mxu0 0.0
    %44 = vmatpush.msra.mxu0 0.0
    %45 = vmatpush.msra.mxu0 0.0
    %46 = vmatpush.msra.mxu0 %v29
    %47 = vmatpush.msra.mxu0 %v28
    %48 = vmatpush.msra.mxu0 %v27
    %49 = vmatpush.msra.mxu0 %v26
    %50 = vmatmul.f32.gmra.mxu0 %v32
    %v51 = vpop.f32.mrf.mxu0
    %v52 = vadd.f32 0.0, %v51
    %53 = vdwg.mxu0
    %v54 = vadd.f32 %v24, %v52
    %vm55 = vcmask 130048
    %56 = vst.msk [vmem:[#allocation2] sm:$0xff] %vm55, %v54
    // Predicated region
    $region18: #{tpu_custom_call.1} parent=1 // pred_check
      %p57 = pneg %p18
    $region19: #{tpu_custom_call.1} parent=1 // pred_check_branch
      %59 = sbr.rel (%p57) target = $region21
    $region20: #{tpu_custom_call.1} parent=1 // pred_region
      %v60 = vld [vmem:[#allocation2] sm:$0xff]
      %v61 = vld [vmem:[%s2] sm:$0x1]
      %v63 = vperm.slane %v61, 0
      %v65 = vadd.f32 %v60, %v63
      %66 = vst.msk [vmem:[#allocation3] sm:$0xff] %vm55, %v65
      %v67 = vsel %vm55, %v65, -inf
      %68 = vmax.xlane.f32.xlu0 %v67
      %v69 = vpop.xlane.xlu0 %68
      %v70 = vsub.f32 %v65, %v69
      %v71 = vmul.f32 %v70, 1.442695
      %v72 = vpow.pop %v71
      %v73 = vsel %vm55, %v72, 0.0
      %74 = vadd.xlane.f32.xlu0 %v73
      %v75 = vpop.xlane.xlu0 %74
      %v76 = vrcp.pop %v75
      %v77 = vmul.f32 %v75, %v76
      %v78 = vsub.f32 1.0, %v77
      %v79 = vmul.f32 %v76, %v78
      %v80 = vadd.f32 %v76, %v79
      %vm81 = vweird.f32 %v75
      %vm82 = vweird.f32 %v76
      %vm83 = vmor %vm81, %vm82
      %v84 = vsel %vm83, %v76, %v80
      %v85 = vand.u32 2147483647, %v75
      %vm86 = vcmp.eq.f32.partialorder %v85, 8.507059e+37
      %v87 = vand.u32 %v75, 2147483648
      %v88 = vor.u32 1.1754944e-38, %v87
      %v89 = vsel %vm86, %v88, %v84
      %v90 = vmul.f32 %v72, %v89
      %91 = vst.msk [vmem:[#allocation5] sm:$0xff] %vm55, %v90
    $region21: #{tpu_custom_call.1} parent=1 // pred_fallthru
      _
    // Predicated region
    $region22: #{tpu_custom_call.1} parent=1 // pred_check
      _
    $region23: #{tpu_custom_call.1} parent=1 // pred_check_branch
      %93 = sbr.rel (0) target = $region25
    $region24: #{tpu_custom_call.1} parent=1 // pred_region
      %95 = vsyncadd [#allocation4], 0
      %s97 = sshll.u32 [#allocation3], 4
      %s98 = int_to_ptr.vmem [resolvable:$true] %s97
      %s99 = sshll.u32 %s3, 4
      %s100 = int_to_ptr.hbm [resolvable:$true] %s99
      %102 = dma.vmem_to_hbm [thread:$0]  %s98, 128, %s100, [#allocation4]
    $region25: #{tpu_custom_call.1} parent=1 // pred_fallthru
      _
    // Predicated region
    $region26: #{tpu_custom_call.1} parent=1 // pred_check
      _
    $region27: #{tpu_custom_call.1} parent=1 // pred_check_branch
      %104 = sbr.rel (0) target = $region29
    $region28: #{tpu_custom_call.1} parent=1 // pred_region
      %106 = vsyncadd [#allocation6], 0
      %s108 = sshll.u32 [#allocation5], 4
      %s109 = int_to_ptr.vmem [resolvable:$true] %s108
      %s110 = sshll.u32 %s4, 4
      %s111 = int_to_ptr.hbm [resolvable:$true] %s110
      %113 = dma.vmem_to_hbm [thread:$0]  %s109, 128, %s111, [#allocation6]
    $region29: #{tpu_custom_call.1} parent=1 // pred_fallthru
      _
    // Predicated region
    $region30: #{tpu_custom_call.1} parent=1 // pred_check
      _
    $region31: #{tpu_custom_call.1} parent=1 // pred_check_branch
      %115 = sbr.rel (0) target = $region33
    $region32: #{tpu_custom_call.1} parent=1 // pred_region
      %117 = dma.done [#allocation4], 128
    $region33: #{tpu_custom_call.1} parent=1 // pred_fallthru
      _
    // Predicated region
    $region34: #{tpu_custom_call.1} parent=1 // pred_check
      _
    $region35: #{tpu_custom_call.1} parent=1 // pred_check_branch
      %119 = sbr.rel (0) target = $region37
    $region36: #{tpu_custom_call.1} parent=1 // pred_region
      %121 = dma.done [#allocation6], 128
    $region37: #{tpu_custom_call.1} parent=1 // pred_fallthru
      _
    %122 = vsyncpa [#allocation4], 1
    %123 = vsyncpa [#allocation6], 1

// kernel: tpu_custom_call.1
$region0: #{tpu_custom_call.1}
  #allocation0 [shape = 'u32[]', space=smem, size = 0x4, offset = 0x4, fixed_abs, tag = 'smem constant byte address 0x4 - core index']
  #allocation1 [shape = 'u32[72,128]{1,0:T(1,128)}', space=vmem, size = 0x9000, scoped, tag = 'internal scratch']
  #allocation2 [shape = 'f32[8,16]{1,0:T(8,128)}', space=vmem, size = 0x1000, scoped, tag = 'scratch operand']
  %s0 = inlined_call_operand.vmem [shape: f32[8,32], index: 0, kind: input, shape index: {}]
  %s1 = inlined_call_operand.vmem [shape: f32[32,16], index: 1, kind: input, shape index: {}]
  %s2 = inlined_call_operand.vmem [shape: f32[1,16], index: 2, kind: input, shape index: {}]
  %s3 = inlined_call_operand.hbm [shape: f32[8,16], index: 3, kind: output, shape index: {0}]
  %s4 = inlined_call_operand.hbm [shape: f32[8,16], index: 4, kind: output, shape index: {1}]
  %5 = xla_tuple %s3, %s4
  %s6 = sld [smem:[#allocation0]]
  $region38: #{tpu_custom_call.1} parent=0
    _
  %s8 = ssub.s32 1, %s6
  %s9 = scalar_select 0, %s8, %s6
  $region1: #{tpu_custom_call.1} parent=0
    #allocation3 [shape = 'u8[4096]{0}', space=vmem, size = 0x1000, scoped, tag = 'output window, operand 0, single buffered']
    #allocation4 [shape = 's32[1]{0}', space=sflag, size = 0x4, scoped, tag = 'scoped memory for tpu_custom_call.1']
    #allocation5 [shape = 'u8[4096]{0}', space=vmem, size = 0x1000, scoped, tag = 'output window, operand 1, single buffered']
    #allocation6 [shape = 's32[1]{0}', space=sflag, size = 0x4, scoped, tag = 'scoped memory for tpu_custom_call.1']
    %10 = vsyncpa [#allocation4], 0
    %11 = vsyncpa [#allocation6], 0
    // Predicated region
    $region2: #{tpu_custom_call.1} parent=1 // pred_check
      _
    $region3: #{tpu_custom_call.1} parent=1 // pred_check_branch
      %13 = sbr.rel (0) target = $region5
    $region4: #{tpu_custom_call.1} parent=1 // pred_region
      _
    $region5: #{tpu_custom_call.1} parent=1 // pred_fallthru
      _
    // Predicated region
    $region6: #{tpu_custom_call.1} parent=1 // pred_check
      _
    $region7: #{tpu_custom_call.1} parent=1 // pred_check_branch
      %15 = sbr.rel (0) target = $region9
    $region8: #{tpu_custom_call.1} parent=1 // pred_region
      _
    $region9: #{tpu_custom_call.1} parent=1 // pred_fallthru
      _
    // Predicated region
    $region10: #{tpu_custom_call.1} parent=1 // pred_check
      _
    $region11: #{tpu_custom_call.1} parent=1 // pred_check_branch
      %17 = sbr.rel (0) target = $region13
    $region12: #{tpu_custom_call.1} parent=1 // pred_region
      _
    $region13: #{tpu_custom_call.1} parent=1 // pred_fallthru
      _
    %p18 = scmp.eq.s32.totalorder 0, 0
    // Predicated region
    $region14: #{tpu_custom_call.1} parent=1 // pred_check
      %p19 = pneg %p18
    $region15: #{tpu_custom_call.1} parent=1 // pred_check_branch
      %21 = sbr.rel (%p19) target = $region17
    $region16: #{tpu_custom_call.1} parent=1 // pred_region
      %vm22 = vcmask 130048
      %23 = vst.msk [vmem:[#allocation2] sm:$0xff] %vm22, 0.0
    $region17: #{tpu_custom_call.1} parent=1 // pred_fallthru
      _
    %v24 = vld [vmem:[#allocation2] sm:$0xff]
    %v25 = vld [vmem:[%s0] sm:$0xff]
    %v26 = vld [vmem:[%s1] sm:$0xff]
    %v27 = vld [vmem:[%s1 + $0x8] sm:$0xff]
    %v28 = vld [vmem:[%s1 + $0x10] sm:$0xff]
    %v29 = vld [vmem:[%s1 + $0x18] sm:$0xff]
    %vm30 = vcmask 261120
    %v32 = vsel %vm30, %v25, 0
    %34 = vmatpush.msra.mxu0 0.0
    %35 = vmatpush.msra.mxu0 0.0
    %36 = vmatpush.msra.mxu0 0.0
    %37 = vmatpush.msra.mxu0 0.0
    %38 = vmatpush.msra.mxu0 0.0
    %39 = vmatpush.msra.mxu0 0.0
    %40 = vmatpush.msra.mxu0 0.0
    %41 = vmatpush.msra.mxu0 0.0
    %42 = vmatpush.msra.mxu0 0.0
    %43 = vmatpush.msra.mxu0 0.0
    %44 = vmatpush.msra.mxu0 0.0
    %45 = vmatpush.msra.mxu0 0.0
    %46 = vmatpush.msra.mxu0 %v29
    %47 = vmatpush.msra.mxu0 %v28
    %48 = vmatpush.msra.mxu0 %v27
    %49 = vmatpush.msra.mxu0 %v26
    %50 = vmatmul.f32.gmra.mxu0 %v32
    %v51 = vpop.f32.mrf.mxu0
    %v52 = vadd.f32 0.0, %v51
    %53 = vdwg.mxu0
    %v54 = vadd.f32 %v24, %v52
    %vm55 = vcmask 130048
    %56 = vst.msk [vmem:[#allocation2] sm:$0xff] %vm55, %v54
    // Predicated region
    $region18: #{tpu_custom_call.1} parent=1 // pred_check
      %p57 = pneg %p18
    $region19: #{tpu_custom_call.1} parent=1 // pred_check_branch
      %59 = sbr.rel (%p57) target = $region21
    $region20: #{tpu_custom_call.1} parent=1 // pred_region
      %v60 = vld [vmem:[#allocation2] sm:$0xff]
      %v61 = vld [vmem:[%s2] sm:$0x1]
      %v63 = vperm.slane %v61, 0
      %v65 = vadd.f32 %v60, %v63
      %66 = vst.msk [vmem:[#allocation3] sm:$0xff] %vm55, %v65
      %v67 = vsel %vm55, %v65, -inf
      %68 = vmax.xlane.f32.xlu0 %v67
      %v69 = vpop.xlane.xlu0 %68
      %v70 = vsub.f32 %v65, %v69
      %v71 = vmul.f32 %v70, 1.442695
      %v72 = vpow.pop %v71
      %v73 = vsel %vm55, %v72, 0.0
      %74 = vadd.xlane.f32.xlu0 %v73
      %v75 = vpop.xlane.xlu0 %74
      %v76 = vrcp.pop %v75
      %v77 = vmul.f32 %v75, %v76
      %v78 = vsub.f32 1.0, %v77
      %v79 = vmul.f32 %v76, %v78
      %v80 = vadd.f32 %v76, %v79
      %vm81 = vweird.f32 %v75
      %vm82 = vweird.f32 %v76
      %vm83 = vmor %vm81, %vm82
      %v84 = vsel %vm83, %v76, %v80
      %v85 = vand.u32 2147483647, %v75
      %vm86 = vcmp.eq.f32.partialorder %v85, 8.507059e+37
      %v87 = vand.u32 %v75, 2147483648
      %v88 = vor.u32 1.1754944e-38, %v87
      %v89 = vsel %vm86, %v88, %v84
      %v90 = vmul.f32 %v72, %v89
      %91 = vst.msk [vmem:[#allocation5] sm:$0xff] %vm55, %v90
    $region21: #{tpu_custom_call.1} parent=1 // pred_fallthru
      _
    // Predicated region
    $region22: #{tpu_custom_call.1} parent=1 // pred_check
      _
    $region23: #{tpu_custom_call.1} parent=1 // pred_check_branch
      %93 = sbr.rel (0) target = $region25
    $region24: #{tpu_custom_call.1} parent=1 // pred_region
      %95 = vsyncadd [#allocation4], 0
      %s97 = sshll.u32 [#allocation3], 4
      %s98 = int_to_ptr.vmem [resolvable:$true] %s97
      %s99 = sshll.u32 %s3, 4
      %s100 = int_to_ptr.hbm [resolvable:$true] %s99
      %102 = dma.vmem_to_hbm [thread:$0]  %s98, 128, %s100, [#allocation4]
    $region25: #{tpu_custom_call.1} parent=1 // pred_fallthru
      _
    // Predicated region
    $region26: #{tpu_custom_call.1} parent=1 // pred_check
      _
    $region27: #{tpu_custom_call.1} parent=1 // pred_check_branch
      %104 = sbr.rel (0) target = $region29
    $region28: #{tpu_custom_call.1} parent=1 // pred_region
      %106 = vsyncadd [#allocation6], 0
      %s108 = sshll.u32 [#allocation5], 4
      %s109 = int_to_ptr.vmem [resolvable:$true] %s108
      %s110 = sshll.u32 %s4, 4
      %s111 = int_to_ptr.hbm [resolvable:$true] %s110
      %113 = dma.vmem_to_hbm [thread:$0]  %s109, 128, %s111, [#allocation6]
    $region29: #{tpu_custom_call.1} parent=1 // pred_fallthru
      _
    // Predicated region
    $region30: #{tpu_custom_call.1} parent=1 // pred_check
      _
    $region31: #{tpu_custom_call.1} parent=1 // pred_check_branch
      %115 = sbr.rel (0) target = $region33
    $region32: #{tpu_custom_call.1} parent=1 // pred_region
      %117 = dma.done [#allocation4], 128
    $region33: #{tpu_custom_call.1} parent=1 // pred_fallthru
      _
    // Predicated region
    $region34: #{tpu_custom_call.1} parent=1 // pred_check
      _
    $region35: #{tpu_custom_call.1} parent=1 // pred_check_branch
      %119 = sbr.rel (0) target = $region37
    $region36: #{tpu_custom_call.1} parent=1 // pred_region
      %121 = dma.done [#allocation6], 128
    $region37: #{tpu_custom_call.1} parent=1 // pred_fallthru
      _
    %122 = vsyncpa [#allocation4], 1
    %123 = vsyncpa [#allocation6], 1

</llo_original>
